<compile_context>
chip_gen: v7x
topology: tpu7x:2x2x1
jax: 0.10.0
libtpu: 0.0.40
codegen_flags: <defaults>
</compile_context>

<pallas_src>
import jax
import jax.numpy as jnp
from jax.experimental import pallas as pl
from jax.experimental.pallas import tpu as pltpu


def _final_add_kernel(w1_ref, w2_ref, w3_ref, w4_ref,
                      x1_ref, x2_ref, x3_ref, x4_ref, o_ref):
    # Wi: (1, TN) resident weight rows; xi / o: (TB, TN) lane-dense tiles.
    # (1, TN) * (TB, TN) is a sublane broadcast handled natively by the VPU.
    o_ref[...] = (w1_ref[...] * x1_ref[...]
                  + w2_ref[...] * x2_ref[...]
                  + w3_ref[...] * x3_ref[...]
                  + w4_ref[...] * x4_ref[...])


def _choose_tiles(num_rows, num_lanes, itemsize, target_tile_bytes=2 << 20):
    """Pick (row_tile, lane_tile) obeying the (8, 128) block rule and aiming
    for ~target_tile_bytes per input/output stream per grid step."""
    tn = num_lanes
    row_bytes = max(num_lanes * itemsize, 1)
    tb = min(num_rows, max(1, target_tile_bytes // row_bytes))

    if num_rows < 8:
        # Full row extent is always legal regardless of divisibility.
        return num_rows, tn
    if tb >= 8:
        # Multiple of 8 rows, full lane extent (lane-dense output stores).
        return tb - (tb % 8), tn

    # A single 8-row slab already exceeds the target: tile lanes too, but only
    # in whole multiples of 128 that evenly divide the lane extent.
    tb = 8
    if num_lanes % 128 == 0 and num_lanes > 128:
        want = max(128, (target_tile_bytes // (tb * itemsize)) // 128 * 128)
        cand = min(num_lanes, want)
        while cand > 128 and num_lanes % cand != 0:
            cand -= 128
        if cand >= 128 and num_lanes % cand == 0:
            tn = cand
    return tb, tn


def final_add_layer(w1, w2, w3, w4, x1, x2, x3, x4):
    B, D, C = x1.shape
    assert w1.shape == (D, C)
    N = D * C
    itemsize = jnp.dtype(x1.dtype).itemsize

    # Layout-preserving flatten: rows = batch, lanes = D*C (lane-dense).
    xs = [x.reshape(B, N) for x in (x1, x2, x3, x4)]
    ws = [w.reshape(1, N) for w in (w1, w2, w3, w4)]

    tb, tn = _choose_tiles(B, N, itemsize)
    grid = (pl.cdiv(B, tb), pl.cdiv(N, tn))

    # 4 inputs + 1 output, double-buffered (10 tile buffers) + resident
    # weight rows, plus ~50% headroom; capped inside v7x's 64 MiB VMEM.
    tile_bytes = tb * tn * itemsize
    vmem_limit = int(1.5 * (10 * tile_bytes + 4 * 2 * tn * itemsize)) + (2 << 20)
    vmem_limit = min(max(vmem_limit, 8 << 20), 60 << 20)

    w_spec = pl.BlockSpec((1, tn), lambda i, j: (0, j))    # resident weight row
    x_spec = pl.BlockSpec((tb, tn), lambda i, j: (i, j))   # large lane-dense tile

    out2d = pl.pallas_call(
        _final_add_kernel,
        out_shape=jax.ShapeDtypeStruct((B, N), x1.dtype),
        grid=grid,
        in_specs=[w_spec, w_spec, w_spec, w_spec,
                  x_spec, x_spec, x_spec, x_spec],
        out_specs=x_spec,
        compiler_params=pltpu.CompilerParams(
            dimension_semantics=("parallel", "parallel"),
            vmem_limit_bytes=vmem_limit),
    )(*ws, *xs)

    return out2d.reshape(B, D, C)


if __name__ == "__main__":
    # in_dims = (batch, D); num_classes = C
    B, D, C = 2, 8, 32

    # Module initializes all weights to ones.
    w1 = jnp.ones((D, C), dtype=jnp.float32)
    w2 = jnp.ones((D, C), dtype=jnp.float32)
    w3 = jnp.ones((D, C), dtype=jnp.float32)
    w4 = jnp.ones((D, C), dtype=jnp.float32)

    key = jax.random.PRNGKey(0)
    k1, k2, k3, k4 = jax.random.split(key, 4)
    x1 = jax.random.normal(k1, (B, D, C), dtype=jnp.float32)
    x2 = jax.random.normal(k2, (B, D, C), dtype=jnp.float32)
    x3 = jax.random.normal(k3, (B, D, C), dtype=jnp.float32)
    x4 = jax.random.normal(k4, (B, D, C), dtype=jnp.float32)

    out = final_add_layer(w1, w2, w3, w4, x1, x2, x3, x4)
    out = jax.block_until_ready(out)

    # Reference check (plain JAX, same broadcasting semantics as torch.mul).
    ref = w1[None] * x1 + w2[None] * x2 + w3[None] * x3 + w4[None] * x4
    assert out.shape == (B, D, C)
    assert jnp.allclose(out, ref, atol=1e-6), "mismatch vs reference"

    # Second check: random weights + larger batch to exercise the
    # weight-broadcast path and row tiling with non-trivial values.
    B2 = 16
    kw1, kw2, kw3, kw4, kx = jax.random.split(jax.random.PRNGKey(1), 5)
    ww = [jax.random.normal(k, (D, C), dtype=jnp.float32)
          for k in (kw1, kw2, kw3, kw4)]
    xx = [jax.random.normal(jax.random.fold_in(kx, i), (B2, D, C),
                            dtype=jnp.float32) for i in range(4)]
    out2 = jax.block_until_ready(final_add_layer(*ww, *xx))
    ref2 = (ww[0][None] * xx[0] + ww[1][None] * xx[1]
            + ww[2][None] * xx[2] + ww[3][None] * xx[3])
    assert jnp.allclose(out2, ref2, atol=1e-5), "mismatch vs reference (rand W)"

    print("KERNEL_OK")
</pallas_src>

<mosaic_0001>
module attributes {stable_mosaic.version = 11 : i64} {
  func.func @_final_add_kernel(%arg0: i32, %arg1: i32, %arg2: memref<1x256xf32, #tpu.memory_space<vmem>>, %arg3: memref<1x256xf32, #tpu.memory_space<vmem>>, %arg4: memref<1x256xf32, #tpu.memory_space<vmem>>, %arg5: memref<1x256xf32, #tpu.memory_space<vmem>>, %arg6: memref<2x256xf32, #tpu.memory_space<vmem>>, %arg7: memref<2x256xf32, #tpu.memory_space<vmem>>, %arg8: memref<2x256xf32, #tpu.memory_space<vmem>>, %arg9: memref<2x256xf32, #tpu.memory_space<vmem>>, %arg10: memref<2x256xf32, #tpu.memory_space<vmem>>) attributes {dimension_semantics = [#tpu.dimension_semantics<parallel>, #tpu.dimension_semantics<parallel>], iteration_bounds = array<i64: 1, 1>, scalar_prefetch = 0 : i64, scratch_operands = 0 : i64, tpu.core_type = #tpu.core_type<tc>, window_params = [{transform_indices = @transform_0, window_bounds = array<i64: 1, 256>}, {transform_indices = @transform_1, window_bounds = array<i64: 1, 256>}, {transform_indices = @transform_2, window_bounds = array<i64: 1, 256>}, {transform_indices = @transform_3, window_bounds = array<i64: 1, 256>}, {transform_indices = @transform_4, window_bounds = array<i64: 2, 256>}, {transform_indices = @transform_5, window_bounds = array<i64: 2, 256>}, {transform_indices = @transform_6, window_bounds = array<i64: 2, 256>}, {transform_indices = @transform_7, window_bounds = array<i64: 2, 256>}, {transform_indices = @transform_8, window_bounds = array<i64: 2, 256>}]} {
    %c0 = arith.constant 0 : index
    %c0_0 = arith.constant 0 : index
    %0 = vector.load %arg2[%c0, %c0_0] : memref<1x256xf32, #tpu.memory_space<vmem>>, vector<1x256xf32>
    %c0_1 = arith.constant 0 : index
    %c0_2 = arith.constant 0 : index
    %1 = vector.load %arg6[%c0_1, %c0_2] : memref<2x256xf32, #tpu.memory_space<vmem>>, vector<2x256xf32>
    %2 = vector.broadcast %0 : vector<1x256xf32> to vector<2x256xf32>
    %3 = arith.mulf %2, %1 : vector<2x256xf32>
    %c0_3 = arith.constant 0 : index
    %c0_4 = arith.constant 0 : index
    %4 = vector.load %arg3[%c0_3, %c0_4] : memref<1x256xf32, #tpu.memory_space<vmem>>, vector<1x256xf32>
    %c0_5 = arith.constant 0 : index
    %c0_6 = arith.constant 0 : index
    %5 = vector.load %arg7[%c0_5, %c0_6] : memref<2x256xf32, #tpu.memory_space<vmem>>, vector<2x256xf32>
    %6 = vector.broadcast %4 : vector<1x256xf32> to vector<2x256xf32>
    %7 = arith.mulf %6, %5 : vector<2x256xf32>
    %8 = arith.addf %3, %7 : vector<2x256xf32>
    %c0_7 = arith.constant 0 : index
    %c0_8 = arith.constant 0 : index
    %9 = vector.load %arg4[%c0_7, %c0_8] : memref<1x256xf32, #tpu.memory_space<vmem>>, vector<1x256xf32>
    %c0_9 = arith.constant 0 : index
    %c0_10 = arith.constant 0 : index
    %10 = vector.load %arg8[%c0_9, %c0_10] : memref<2x256xf32, #tpu.memory_space<vmem>>, vector<2x256xf32>
    %11 = vector.broadcast %9 : vector<1x256xf32> to vector<2x256xf32>
    %12 = arith.mulf %11, %10 : vector<2x256xf32>
    %13 = arith.addf %8, %12 : vector<2x256xf32>
    %c0_11 = arith.constant 0 : index
    %c0_12 = arith.constant 0 : index
    %14 = vector.load %arg5[%c0_11, %c0_12] : memref<1x256xf32, #tpu.memory_space<vmem>>, vector<1x256xf32>
    %c0_13 = arith.constant 0 : index
    %c0_14 = arith.constant 0 : index
    %15 = vector.load %arg9[%c0_13, %c0_14] : memref<2x256xf32, #tpu.memory_space<vmem>>, vector<2x256xf32>
    %16 = vector.broadcast %14 : vector<1x256xf32> to vector<2x256xf32>
    %17 = arith.mulf %16, %15 : vector<2x256xf32>
    %18 = arith.addf %13, %17 : vector<2x256xf32>
    %c0_15 = arith.constant 0 : index
    %c0_16 = arith.constant 0 : index
    %19 = vector.load %arg10[%c0_15, %c0_16] : memref<2x256xf32, #tpu.memory_space<vmem>>, vector<2x256xf32>
    tpu.vector_store %arg10[%c0_15, %c0_16], %18 {strides = array<i32>} : memref<2x256xf32, #tpu.memory_space<vmem>>, vector<2x256xf32>,
    return
  }
  func.func @transform_0(%arg0: i32, %arg1: i32) -> (i32, i32) {
    %c0_i32 = arith.constant 0 : i32
    %c0_i32_0 = arith.constant 0 : i32
    return %c0_i32, %arg1 : i32, i32
  }
  func.func @transform_1(%arg0: i32, %arg1: i32) -> (i32, i32) {
    %c0_i32 = arith.constant 0 : i32
    %c0_i32_0 = arith.constant 0 : i32
    return %c0_i32, %arg1 : i32, i32
  }
  func.func @transform_2(%arg0: i32, %arg1: i32) -> (i32, i32) {
    %c0_i32 = arith.constant 0 : i32
    %c0_i32_0 = arith.constant 0 : i32
    return %c0_i32, %arg1 : i32, i32
  }
  func.func @transform_3(%arg0: i32, %arg1: i32) -> (i32, i32) {
    %c0_i32 = arith.constant 0 : i32
    %c0_i32_0 = arith.constant 0 : i32
    return %c0_i32, %arg1 : i32, i32
  }
  func.func @transform_4(%arg0: i32, %arg1: i32) -> (i32, i32) {
    %c0_i32 = arith.constant 0 : i32
    return %arg0, %arg1 : i32, i32
  }
  func.func @transform_5(%arg0: i32, %arg1: i32) -> (i32, i32) {
    %c0_i32 = arith.constant 0 : i32
    return %arg0, %arg1 : i32, i32
  }
  func.func @transform_6(%arg0: i32, %arg1: i32) -> (i32, i32) {
    %c0_i32 = arith.constant 0 : i32
    return %arg0, %arg1 : i32, i32
  }
  func.func @transform_7(%arg0: i32, %arg1: i32) -> (i32, i32) {
    %c0_i32 = arith.constant 0 : i32
    return %arg0, %arg1 : i32, i32
  }
  func.func @transform_8(%arg0: i32, %arg1: i32) -> (i32, i32) {
    %c0_i32 = arith.constant 0 : i32
    return %arg0, %arg1 : i32, i32
  }
}

</mosaic_0001>

<llo_original>
// kernel: tpu_custom_call.1
$region0: #{tpu_custom_call.1}
  #allocation0 [shape = 'u32[]', space=smem, size = 0x4, offset = 0x4, fixed_abs, tag = 'smem constant byte address 0x4 - core index']
  #allocation1 [shape = 'u32[144,128]{1,0:T(1,128)}', space=vmem, size = 0x12000, scoped, tag = 'internal scratch']
  %s0 = inlined_call_operand.hbm [shape: f32[1,256], index: 0, kind: input, shape index: {}]
  %s1 = inlined_call_operand.vmem [shape: f32[1,256], index: 1, kind: input, shape index: {}]
  %s2 = inlined_call_operand.hbm [shape: f32[1,256], index: 2, kind: input, shape index: {}]
  %s3 = inlined_call_operand.hbm [shape: f32[1,256], index: 3, kind: input, shape index: {}]
  %s4 = inlined_call_operand.vmem [shape: f32[2,256], index: 4, kind: input, shape index: {}]
  %s5 = inlined_call_operand.vmem [shape: f32[2,256], index: 5, kind: input, shape index: {}]
  %s6 = inlined_call_operand.vmem [shape: f32[2,256], index: 6, kind: input, shape index: {}]
  %s7 = inlined_call_operand.vmem [shape: f32[2,256], index: 7, kind: input, shape index: {}]
  %s8 = inlined_call_operand.hbm [shape: f32[2,256], index: 8, kind: output, shape index: {}]
  %s9 = sld [smem:[#allocation0]]
  $region54: #{tpu_custom_call.1} parent=0
    _
  %s11 = ssub.s32 1, %s9
  %s12 = scalar_select 0, %s11, %s9
  $region1: #{tpu_custom_call.1} parent=0
    #allocation2 [shape = 'u8[1024]{0}', space=vmem, size = 0x400, scoped, tag = 'input window, operand 0, single buffered']
    #allocation3 [shape = 's32[1]{0}', space=sflag, size = 0x4, scoped, tag = 'scoped memory for tpu_custom_call.1']
    #allocation4 [shape = 's32[1]{0}', space=sflag, size = 0x4, scoped, tag = 'scoped memory for tpu_custom_call.1']
    #allocation5 [shape = 'u8[1024]{0}', space=vmem, size = 0x400, scoped, tag = 'input window, operand 2, single buffered']
    #allocation6 [shape = 's32[1]{0}', space=sflag, size = 0x4, scoped, tag = 'scoped memory for tpu_custom_call.1']
    #allocation7 [shape = 'u8[1024]{0}', space=vmem, size = 0x400, scoped, tag = 'input window, operand 3, single buffered']
    #allocation8 [shape = 'u8[2048]{0}', space=vmem, size = 0x800, scoped, tag = 'output window, operand 0, single buffered']
    %13 = vsyncpa [#allocation3], 0
    %14 = vsyncpa [#allocation6], 0
    %15 = vsyncpa [#allocation4], 0
    // Predicated region
    $region2: #{tpu_custom_call.1} parent=1 // pred_check
      _
    $region3: #{tpu_custom_call.1} parent=1 // pred_check_branch
      %17 = sbr.rel (0) target = $region5
    $region4: #{tpu_custom_call.1} parent=1 // pred_region
      %s19 = ssub.s32 32, 32
      %20 = vsyncadd [#allocation3], %s19
      %s22 = sshll.u32 [#allocation2], 4
      %s23 = int_to_ptr.vmem [resolvable:$true] %s22
      %25 = dma.hbm_to_vmem [thread:$0]  %s0, 32, %s23, [#allocation3]
    $region5: #{tpu_custom_call.1} parent=1 // pred_fallthru
      _
    // Predicated region
    $region6: #{tpu_custom_call.1} parent=1 // pred_check
      _
    $region7: #{tpu_custom_call.1} parent=1 // pred_check_branch
      %27 = sbr.rel (0) target = $region9
    $region8: #{tpu_custom_call.1} parent=1 // pred_region
      _
    $region9: #{tpu_custom_call.1} parent=1 // pred_fallthru
      _
    // Predicated region
    $region10: #{tpu_custom_call.1} parent=1 // pred_check
      _
    $region11: #{tpu_custom_call.1} parent=1 // pred_check_branch
      %29 = sbr.rel (0) target = $region13
    $region12: #{tpu_custom_call.1} parent=1 // pred_region
      %s31 = ssub.s32 32, 32
      %32 = vsyncadd [#allocation6], %s31
      %s34 = sshll.u32 [#allocation5], 4
      %s35 = int_to_ptr.vmem [resolvable:$true] %s34
      %37 = dma.hbm_to_vmem [thread:$0]  %s2, 32, %s35, [#allocation6]
    $region13: #{tpu_custom_call.1} parent=1 // pred_fallthru
      _
    // Predicated region
    $region14: #{tpu_custom_call.1} parent=1 // pred_check
      _
    $region15: #{tpu_custom_call.1} parent=1 // pred_check_branch
      %39 = sbr.rel (0) target = $region17
    $region16: #{tpu_custom_call.1} parent=1 // pred_region
      %s41 = ssub.s32 32, 32
      %42 = vsyncadd [#allocation6], %s41
      %s44 = sshll.u32 [#allocation7], 4
      %s45 = int_to_ptr.vmem [resolvable:$true] %s44
      %47 = dma.hbm_to_vmem [thread:$0]  %s3, 32, %s45, [#allocation6]
    $region17: #{tpu_custom_call.1} parent=1 // pred_fallthru
      _
    // Predicated region
    $region18: #{tpu_custom_call.1} parent=1 // pred_check
      _
    $region19: #{tpu_custom_call.1} parent=1 // pred_check_branch
      %49 = sbr.rel (0) target = $region21
    $region20: #{tpu_custom_call.1} parent=1 // pred_region
      _
    $region21: #{tpu_custom_call.1} parent=1 // pred_fallthru
      _
    // Predicated region
    $region22: #{tpu_custom_call.1} parent=1 // pred_check
      _
    $region23: #{tpu_custom_call.1} parent=1 // pred_check_branch
      %51 = sbr.rel (0) target = $region25
    $region24: #{tpu_custom_call.1} parent=1 // pred_region
      _
    $region25: #{tpu_custom_call.1} parent=1 // pred_fallthru
      _
    // Predicated region
    $region26: #{tpu_custom_call.1} parent=1 // pred_check
      _
    $region27: #{tpu_custom_call.1} parent=1 // pred_check_branch
      %53 = sbr.rel (0) target = $region29
    $region28: #{tpu_custom_call.1} parent=1 // pred_region
      _
    $region29: #{tpu_custom_call.1} parent=1 // pred_fallthru
      _
    // Predicated region
    $region30: #{tpu_custom_call.1} parent=1 // pred_check
      _
    $region31: #{tpu_custom_call.1} parent=1 // pred_check_branch
      %55 = sbr.rel (0) target = $region33
    $region32: #{tpu_custom_call.1} parent=1 // pred_region
      _
    $region33: #{tpu_custom_call.1} parent=1 // pred_fallthru
      _
    // Predicated region
    $region34: #{tpu_custom_call.1} parent=1 // pred_check
      _
    $region35: #{tpu_custom_call.1} parent=1 // pred_check_branch
      %57 = sbr.rel (0) target = $region37
    $region36: #{tpu_custom_call.1} parent=1 // pred_region
      %58 = dma.done [#allocation3], 32
    $region37: #{tpu_custom_call.1} parent=1 // pred_fallthru
      _
    // Predicated region
    $region38: #{tpu_custom_call.1} parent=1 // pred_check
      _
    $region39: #{tpu_custom_call.1} parent=1 // pred_check_branch
      %60 = sbr.rel (0) target = $region41
    $region40: #{tpu_custom_call.1} parent=1 // pred_region
      %61 = dma.done [#allocation6], 32
    $region41: #{tpu_custom_call.1} parent=1 // pred_fallthru
      _
    // Predicated region
    $region42: #{tpu_custom_call.1} parent=1 // pred_check
      _
    $region43: #{tpu_custom_call.1} parent=1 // pred_check_branch
      %63 = sbr.rel (0) target = $region45
    $region44: #{tpu_custom_call.1} parent=1 // pred_region
      %64 = dma.done [#allocation6], 32
    $region45: #{tpu_custom_call.1} parent=1 // pred_fallthru
      _
    %v65 = vld [vmem:[#allocation2] sm:$0x3]
    %v66 = vld [vmem:[%s4] sm:$0xf]
    %v68 = vlaneseq
    %v69 = vshrl.u32 %v68, 7
    %v70 = vsub.s32 0, %v69
    %v71 = vrot.slane %v65, %v70
    %v72 = vlaneseq
    %v73 = vshrl.u32 %v72, 7
    %v74 = vsub.s32 1, %v73
    %v75 = vrot.slane %v65, %v74
    %v80 = vunpack.c.l.s4 1983009808
    %v81 = vunpack.c.0.s8 %v80
    %v82 = vlaneseq
    %v83 = vshrl.u32 %v82, 7
    %v84 = vsub.s32 %v81, %v83
    %v85 = vrot.slane %v66, %v84
    %v86 = vcombine.high %v85, %v85
    %v89 = vmul.f32 %v71, %v85
    %v90 = vmul.f32 %v75, %v86
    %v91 = vld [vmem:[%s1] sm:$0x3]
    %v92 = vld [vmem:[%s5] sm:$0xf]
    %v94 = vlaneseq
    %v95 = vshrl.u32 %v94, 7
    %v96 = vsub.s32 0, %v95
    %v97 = vrot.slane %v91, %v96
    %v98 = vlaneseq
    %v99 = vshrl.u32 %v98, 7
    %v100 = vsub.s32 1, %v99
    %v101 = vrot.slane %v91, %v100
    %v106 = vunpack.c.l.s4 1983009808
    %v107 = vunpack.c.0.s8 %v106
    %v108 = vlaneseq
    %v109 = vshrl.u32 %v108, 7
    %v110 = vsub.s32 %v107, %v109
    %v111 = vrot.slane %v92, %v110
    %v112 = vcombine.high %v111, %v111
    %v115 = vmul.f32 %v97, %v111
    %v116 = vmul.f32 %v101, %v112
    %v117 = vadd.f32 %v89, %v115
    %v118 = vadd.f32 %v90, %v116
    %v119 = vld [vmem:[#allocation5] sm:$0x3]
    %v120 = vld [vmem:[%s6] sm:$0xf]
    %v122 = vlaneseq
    %v123 = vshrl.u32 %v122, 7
    %v124 = vsub.s32 0, %v123
    %v125 = vrot.slane %v119, %v124
    %v126 = vlaneseq
    %v127 = vshrl.u32 %v126, 7
    %v128 = vsub.s32 1, %v127
    %v129 = vrot.slane %v119, %v128
    %v134 = vunpack.c.l.s4 1983009808
    %v135 = vunpack.c.0.s8 %v134
    %v136 = vlaneseq
    %v137 = vshrl.u32 %v136, 7
    %v138 = vsub.s32 %v135, %v137
    %v139 = vrot.slane %v120, %v138
    %v140 = vcombine.high %v139, %v139
    %v143 = vmul.f32 %v125, %v139
    %v144 = vmul.f32 %v129, %v140
    %v145 = vadd.f32 %v117, %v143
    %v146 = vadd.f32 %v118, %v144
    %v147 = vld [vmem:[#allocation7] sm:$0x3]
    %v148 = vld [vmem:[%s7] sm:$0xf]
    %v150 = vlaneseq
    %v151 = vshrl.u32 %v150, 7
    %v152 = vsub.s32 0, %v151
    %v153 = vrot.slane %v147, %v152
    %v154 = vlaneseq
    %v155 = vshrl.u32 %v154, 7
    %v156 = vsub.s32 1, %v155
    %v157 = vrot.slane %v147, %v156
    %v162 = vunpack.c.l.s4 1983009808
    %v163 = vunpack.c.0.s8 %v162
    %v164 = vlaneseq
    %v165 = vshrl.u32 %v164, 7
    %v166 = vsub.s32 %v163, %v165
    %v167 = vrot.slane %v148, %v166
    %v168 = vcombine.high %v167, %v167
    %v171 = vmul.f32 %v153, %v167
    %v172 = vmul.f32 %v157, %v168
    %v173 = vadd.f32 %v145, %v171
    %v174 = vadd.f32 %v146, %v172
    %v177 = vcombine.low %v173, %v174
    %v179 = vunpack.c.l.s4 1983009808
    %v180 = vunpack.c.0.s8 %v179
    %v181 = vlaneseq
    %v182 = vshrl.u32 %v181, 7
    %v183 = vsub.s32 %v180, %v182
    %v184 = vrot.slane %v177, %v183
    %186 = vst [vmem:[#allocation8] sm:$0xf] %v184
    // Predicated region
    $region46: #{tpu_custom_call.1} parent=1 // pred_check
      _
    $region47: #{tpu_custom_call.1} parent=1 // pred_check_branch
      %188 = sbr.rel (0) target = $region49
    $region48: #{tpu_custom_call.1} parent=1 // pred_region
      %s190 = ssub.s32 64, 64
      %191 = vsyncadd [#allocation4], %s190
      %s193 = sshll.u32 [#allocation8], 4
      %s194 = int_to_ptr.vmem [resolvable:$true] %s193
      %196 = dma.vmem_to_hbm [thread:$0]  %s194, 64, %s8, [#allocation4]
    $region49: #{tpu_custom_call.1} parent=1 // pred_fallthru
      _
    // Predicated region
    $region50: #{tpu_custom_call.1} parent=1 // pred_check
      _
    $region51: #{tpu_custom_call.1} parent=1 // pred_check_branch
      %198 = sbr.rel (0) target = $region53
    $region52: #{tpu_custom_call.1} parent=1 // pred_region
      %199 = dma.done [#allocation4], 64
    $region53: #{tpu_custom_call.1} parent=1 // pred_fallthru
      _
    %200 = vsyncpa [#allocation3], 1
    %201 = vsyncpa [#allocation6], 1
    %202 = vsyncpa [#allocation4], 1

</llo_original>
